<compile_context>
chip_gen: v7x
topology: tpu7x:2x2x1
jax: 0.10.0
libtpu: 0.0.40
codegen_flags: <defaults>
</compile_context>

<pallas_src>
import jax
import jax.numpy as jnp
from jax.experimental import pallas as pl
from jax.experimental.pallas import tpu as pltpu

INPUT_FEATURES = [
    'ankle', 'arm-length', 'bicep', 'calf', 'chest', 'forearm', 'height',
    'hip', 'leg-length', 'shoulder-breadth', 'shoulder-to-crotch', 'thigh',
    'waist', 'wrist', 'height_cm', 'weight_kg', 'new_weight'
]
OUTPUT_FEATURES = [
    'ankle', 'bicep', 'calf', 'chest', 'forearm', 'hip', 'shoulder-breadth',
    'shoulder-to-crotch', 'thigh', 'waist', 'wrist'
]
INPUT_SIZE = len(INPUT_FEATURES)    # 17
OUTPUT_SIZE = len(OUTPUT_FEATURES)  # 11
OUT_PAD = 128                       # lane-dense padded output width
H1, H2, H3 = 256, 128, 64
BN_EPS = 1e-5


def _round_up(n, m):
    return ((n + m - 1) // m) * m


def _device_kind():
    try:
        return jax.devices()[0].device_kind.lower()
    except Exception:
        return ""


def _elementwise_dtype():
    """bf16 elementwise only where the VPU is bf16-native (v6e / v7x)."""
    kind = _device_kind()
    if ("v6" in kind) or ("v7" in kind) or ("tpu7" in kind):
        return jnp.bfloat16
    return jnp.float32


def _mlp_kernel(x_ref, w1_ref, b1_ref, w2_ref, b2_ref, w3_ref, b3_ref,
                w4_ref, b4_ref, o_ref):
    """4-layer MLP on one (tile_b, 17) batch tile.

    Matmuls: bf16 MXU, f32 accumulation.
    Hidden-layer bias+ReLU run in the bias dtype (bf16 on v6e/v7x, f32 on
    v5e), which also sets the dtype of the intermediate activations.
    Final layer stays f32 and writes a lane-dense 128-wide block.
    """
    ew = b1_ref.dtype

    x = x_ref[...].astype(jnp.bfloat16)

    h = jnp.dot(x, w1_ref[...], preferred_element_type=jnp.float32)
    h = jnp.maximum(h.astype(ew) + b1_ref[...], 0.0).astype(jnp.bfloat16)

    h = jnp.dot(h, w2_ref[...], preferred_element_type=jnp.float32)
    h = jnp.maximum(h.astype(ew) + b2_ref[...], 0.0).astype(jnp.bfloat16)

    h = jnp.dot(h, w3_ref[...], preferred_element_type=jnp.float32)
    h = jnp.maximum(h.astype(ew) + b3_ref[...], 0.0).astype(jnp.bfloat16)

    h = jnp.dot(h, w4_ref[...], preferred_element_type=jnp.float32)
    o_ref[...] = (h + b4_ref[...]).astype(o_ref.dtype)


def body_measurement_forward(x, params, *, tile_b=4096):
    """x: (B, 17) float32 -> (B, 11) float32."""
    B = x.shape[0]
    kind = _device_kind()
    is_v5 = "v5" in kind
    is_v7 = ("v7" in kind) or ("tpu7" in kind)
    ew = _elementwise_dtype()

    # Generation-aware tile cap (VMEM budget): 4096 fits the 32 MiB scoped
    # default on v6e/v7x; cap at 2048 on v5e and also raise its 16 MiB default.
    tile_b = min(tile_b, 2048 if is_v5 else 4096)
    # v7x: keep >= 4 grid steps so the parallel axis can use both TensorCores.
    if is_v7:
        tile_b = min(tile_b, _round_up(pl.cdiv(B, 4), 8))
    # multiple of 8 (sublane), never larger than needed for this batch.
    tile_b = max(8, min(_round_up(tile_b, 8), _round_up(B, 8)))
    grid = (pl.cdiv(B, tile_b),)   # ragged last block handled by Pallas

    operands = (
        params["w1"], params["b1"].astype(ew),
        params["w2"], params["b2"].astype(ew),
        params["w3"], params["b3"].astype(ew),
        params["w4"], params["b4"],          # final bias stays f32
    )

    x_spec = pl.BlockSpec((tile_b, INPUT_SIZE), lambda i: (i, 0))
    weight_specs = [pl.BlockSpec(op.shape, lambda i: (0, 0)) for op in operands]
    out_spec = pl.BlockSpec((tile_b, OUT_PAD), lambda i: (i, 0))

    flops = 2 * B * (INPUT_SIZE * H1 + H1 * H2 + H2 * H3 + H3 * OUT_PAD)
    weight_bytes = sum(int(op.size) * op.dtype.itemsize for op in operands)
    bytes_accessed = B * (INPUT_SIZE + OUT_PAD) * 4 + weight_bytes

    out = pl.pallas_call(
        _mlp_kernel,
        out_shape=jax.ShapeDtypeStruct((B, OUT_PAD), jnp.float32),
        grid=grid,
        in_specs=[x_spec] + weight_specs,
        out_specs=out_spec,
        compiler_params=pltpu.CompilerParams(
            dimension_semantics=("parallel",),
            vmem_limit_bytes=(32 * 1024 * 1024 if is_v5 else None)),
        cost_estimate=pl.CostEstimate(
            flops=flops, transcendentals=0, bytes_accessed=bytes_accessed),
    )(x, *operands)
    return out[:, :OUTPUT_SIZE]


def init_params(key):
    """Deterministic synthetic parameters matching the PyTorch module shapes,
    with eval-mode BatchNorm folded into fc1 / fc2.  Weights stored bf16
    (MXU-native), biases f32; fc4 weight/bias zero-padded to 128 lanes."""
    ks = jax.random.split(key, 16)

    def lin(kw, kb, fan_in, fan_out):
        bound = 1.0 / jnp.sqrt(fan_in)
        w = jax.random.uniform(kw, (fan_in, fan_out), jnp.float32, -bound, bound)
        b = jax.random.uniform(kb, (1, fan_out), jnp.float32, -bound, bound)
        return w, b

    w1, b1 = lin(ks[0], ks[1], INPUT_SIZE, H1)
    w2, b2 = lin(ks[2], ks[3], H1, H2)
    w3, b3 = lin(ks[4], ks[5], H2, H3)
    w4, b4 = lin(ks[6], ks[7], H3, OUTPUT_SIZE)

    def bn(kg, kb, km, kv, n):
        gamma = 1.0 + 0.1 * jax.random.normal(kg, (n,), jnp.float32)
        beta = 0.1 * jax.random.normal(kb, (n,), jnp.float32)
        mean = 0.05 * jax.random.normal(km, (n,), jnp.float32)
        var = 1.0 + 0.1 * jax.random.uniform(kv, (n,), jnp.float32)
        return gamma, beta, mean, var

    g1, be1, m1, v1 = bn(ks[8], ks[9], ks[10], ks[11], H1)
    g2, be2, m2, v2 = bn(ks[12], ks[13], ks[14], ks[15], H2)

    # Fold eval-mode BN:  bn(y) = (y - mean) * s + beta,  s = gamma / sqrt(var + eps)
    s1 = g1 / jnp.sqrt(v1 + BN_EPS)
    s2 = g2 / jnp.sqrt(v2 + BN_EPS)
    w1f = w1 * s1[None, :]
    b1f = (b1 - m1[None, :]) * s1[None, :] + be1[None, :]
    w2f = w2 * s2[None, :]
    b2f = (b2 - m2[None, :]) * s2[None, :] + be2[None, :]

    # Lane-dense final layer: zero-pad (64, 11) -> (64, 128), (1, 11) -> (1, 128).
    w4p = jnp.zeros((H3, OUT_PAD), jnp.float32).at[:, :OUTPUT_SIZE].set(w4)
    b4p = jnp.zeros((1, OUT_PAD), jnp.float32).at[:, :OUTPUT_SIZE].set(b4)

    return {
        "w1": w1f.astype(jnp.bfloat16), "b1": b1f,
        "w2": w2f.astype(jnp.bfloat16), "b2": b2f,
        "w3": w3.astype(jnp.bfloat16), "b3": b3,
        "w4": w4p.astype(jnp.bfloat16), "b4": b4p,
    }


def _reference_forward(x, p, ew):
    """Pure-JAX reference mirroring the kernel's mixed-precision math."""
    def hidden(h, w, b):
        acc = jnp.dot(h.astype(jnp.bfloat16), w, preferred_element_type=jnp.float32)
        return jnp.maximum(acc.astype(ew) + b.astype(ew), 0.0).astype(jnp.bfloat16)

    h = hidden(x, p["w1"], p["b1"])
    h = hidden(h, p["w2"], p["b2"])
    h = hidden(h, p["w3"], p["b3"])
    out = jnp.dot(h, p["w4"], preferred_element_type=jnp.float32) + p["b4"]
    return out[:, :OUTPUT_SIZE]


def _reference_forward_f32(x, p):
    """Full-f32 reference (semantics of the original PyTorch module)."""
    h = jnp.maximum(x @ p["w1"].astype(jnp.float32) + p["b1"], 0.0)
    h = jnp.maximum(h @ p["w2"].astype(jnp.float32) + p["b2"], 0.0)
    h = jnp.maximum(h @ p["w3"].astype(jnp.float32) + p["b3"], 0.0)
    out = h @ p["w4"].astype(jnp.float32) + p["b4"]
    return out[:, :OUTPUT_SIZE]


if __name__ == "__main__":
    key = jax.random.PRNGKey(0)
    kx, kp = jax.random.split(key)
    B = 8
    x = jax.random.normal(kx, (B, INPUT_SIZE), jnp.float32)
    params = init_params(kp)

    out = body_measurement_forward(x, params)
    out = jax.block_until_ready(out)
    assert out.shape == (B, OUTPUT_SIZE)

    ref = _reference_forward(x, params, _elementwise_dtype())
    assert jnp.allclose(out, ref, atol=2e-2, rtol=2e-2), "mismatch vs mixed-precision reference"

    ref32 = _reference_forward_f32(x, params)
    assert jnp.allclose(out, ref32, atol=5e-2, rtol=5e-2), "mismatch vs f32 reference"

    print("KERNEL_OK")
</pallas_src>

<mosaic_0001>
module attributes {stable_mosaic.version = 11 : i64} {
  func.func @_mlp_kernel(%arg0: i32, %arg1: memref<8x17xf32, #tpu.memory_space<vmem>>, %arg2: memref<17x256xbf16, #tpu.memory_space<vmem>>, %arg3: memref<1x256xf32, #tpu.memory_space<vmem>>, %arg4: memref<256x128xbf16, #tpu.memory_space<vmem>>, %arg5: memref<1x128xf32, #tpu.memory_space<vmem>>, %arg6: memref<128x64xbf16, #tpu.memory_space<vmem>>, %arg7: memref<1x64xf32, #tpu.memory_space<vmem>>, %arg8: memref<64x128xbf16, #tpu.memory_space<vmem>>, %arg9: memref<1x128xf32, #tpu.memory_space<vmem>>, %arg10: memref<8x128xf32, #tpu.memory_space<vmem>>) attributes {dimension_semantics = [#tpu.dimension_semantics<parallel>], iteration_bounds = array<i64: 1>, scalar_prefetch = 0 : i64, scratch_operands = 0 : i64, tpu.core_type = #tpu.core_type<tc>, window_params = [{transform_indices = @transform_0, window_bounds = array<i64: 8, 17>}, {pipeline_mode = #tpu.pipeline_mode<synchronous>, transform_indices = @transform_1, window_bounds = array<i64: 17, 256>}, {pipeline_mode = #tpu.pipeline_mode<synchronous>, transform_indices = @transform_2, window_bounds = array<i64: 1, 256>}, {pipeline_mode = #tpu.pipeline_mode<synchronous>, transform_indices = @transform_3, window_bounds = array<i64: 256, 128>}, {pipeline_mode = #tpu.pipeline_mode<synchronous>, transform_indices = @transform_4, window_bounds = array<i64: 1, 128>}, {pipeline_mode = #tpu.pipeline_mode<synchronous>, transform_indices = @transform_5, window_bounds = array<i64: 128, 64>}, {pipeline_mode = #tpu.pipeline_mode<synchronous>, transform_indices = @transform_6, window_bounds = array<i64: 1, 64>}, {pipeline_mode = #tpu.pipeline_mode<synchronous>, transform_indices = @transform_7, window_bounds = array<i64: 64, 128>}, {pipeline_mode = #tpu.pipeline_mode<synchronous>, transform_indices = @transform_8, window_bounds = array<i64: 1, 128>}, {transform_indices = @transform_9, window_bounds = array<i64: 8, 128>}]} {
    %c0 = arith.constant 0 : index
    %c0_0 = arith.constant 0 : index
    %0 = vector.load %arg1[%c0, %c0_0] : memref<8x17xf32, #tpu.memory_space<vmem>>, vector<8x17xf32>
    %1 = arith.truncf %0 : vector<8x17xf32> to vector<8x17xbf16>
    %c0_1 = arith.constant 0 : index
    %c0_2 = arith.constant 0 : index
    %2 = vector.load %arg2[%c0_1, %c0_2] : memref<17x256xbf16, #tpu.memory_space<vmem>>, vector<17x256xbf16>
    %cst = arith.constant dense<0.000000e+00> : vector<8x256xf32>
    %3 = tpu.matmul %1, %2, %cst {dimension_numbers = #tpu.dot_dimension_numbers<[1], [0], [0], [1], [0, 0, 1, 1], [], []>} : vector<8x17xbf16>, vector<17x256xbf16>, vector<8x256xf32> -> vector<8x256xf32>
    %c0_3 = arith.constant 0 : index
    %c0_4 = arith.constant 0 : index
    %4 = vector.load %arg3[%c0_3, %c0_4] : memref<1x256xf32, #tpu.memory_space<vmem>>, vector<1x256xf32>
    %5 = vector.broadcast %4 : vector<1x256xf32> to vector<8x256xf32>
    %6 = arith.addf %3, %5 : vector<8x256xf32>
    %cst_5 = arith.constant 0.000000e+00 : f32
    %7 = vector.broadcast %cst_5 : f32 to vector<8x256xf32>
    %8 = arith.maximumf %6, %7 : vector<8x256xf32>
    %9 = arith.truncf %8 : vector<8x256xf32> to vector<8x256xbf16>
    %c0_6 = arith.constant 0 : index
    %c0_7 = arith.constant 0 : index
    %10 = vector.load %arg4[%c0_6, %c0_7] : memref<256x128xbf16, #tpu.memory_space<vmem>>, vector<256x128xbf16>
    %cst_8 = arith.constant dense<0.000000e+00> : vector<8x128xf32>
    %11 = tpu.matmul %9, %10, %cst_8 {dimension_numbers = #tpu.dot_dimension_numbers<[1], [0], [0], [1], [0, 0, 1, 1], [], []>} : vector<8x256xbf16>, vector<256x128xbf16>, vector<8x128xf32> -> vector<8x128xf32>
    %c0_9 = arith.constant 0 : index
    %c0_10 = arith.constant 0 : index
    %12 = vector.load %arg5[%c0_9, %c0_10] : memref<1x128xf32, #tpu.memory_space<vmem>>, vector<1x128xf32>
    %13 = vector.broadcast %12 : vector<1x128xf32> to vector<8x128xf32>
    %14 = arith.addf %11, %13 : vector<8x128xf32>
    %cst_11 = arith.constant 0.000000e+00 : f32
    %15 = vector.broadcast %cst_11 : f32 to vector<8x128xf32>
    %16 = arith.maximumf %14, %15 : vector<8x128xf32>
    %17 = arith.truncf %16 : vector<8x128xf32> to vector<8x128xbf16>
    %c0_12 = arith.constant 0 : index
    %c0_13 = arith.constant 0 : index
    %18 = vector.load %arg6[%c0_12, %c0_13] : memref<128x64xbf16, #tpu.memory_space<vmem>>, vector<128x64xbf16>
    %cst_14 = arith.constant dense<0.000000e+00> : vector<8x64xf32>
    %19 = tpu.matmul %17, %18, %cst_14 {dimension_numbers = #tpu.dot_dimension_numbers<[1], [0], [0], [1], [0, 0, 1, 1], [], []>} : vector<8x128xbf16>, vector<128x64xbf16>, vector<8x64xf32> -> vector<8x64xf32>
    %c0_15 = arith.constant 0 : index
    %c0_16 = arith.constant 0 : index
    %20 = vector.load %arg7[%c0_15, %c0_16] : memref<1x64xf32, #tpu.memory_space<vmem>>, vector<1x64xf32>
    %21 = vector.broadcast %20 : vector<1x64xf32> to vector<8x64xf32>
    %22 = arith.addf %19, %21 : vector<8x64xf32>
    %cst_17 = arith.constant 0.000000e+00 : f32
    %23 = vector.broadcast %cst_17 : f32 to vector<8x64xf32>
    %24 = arith.maximumf %22, %23 : vector<8x64xf32>
    %25 = arith.truncf %24 : vector<8x64xf32> to vector<8x64xbf16>
    %c0_18 = arith.constant 0 : index
    %c0_19 = arith.constant 0 : index
    %26 = vector.load %arg8[%c0_18, %c0_19] : memref<64x128xbf16, #tpu.memory_space<vmem>>, vector<64x128xbf16>
    %cst_20 = arith.constant dense<0.000000e+00> : vector<8x128xf32>
    %27 = tpu.matmul %25, %26, %cst_20 {dimension_numbers = #tpu.dot_dimension_numbers<[1], [0], [0], [1], [0, 0, 1, 1], [], []>} : vector<8x64xbf16>, vector<64x128xbf16>, vector<8x128xf32> -> vector<8x128xf32>
    %c0_21 = arith.constant 0 : index
    %c0_22 = arith.constant 0 : index
    %28 = vector.load %arg9[%c0_21, %c0_22] : memref<1x128xf32, #tpu.memory_space<vmem>>, vector<1x128xf32>
    %29 = vector.broadcast %28 : vector<1x128xf32> to vector<8x128xf32>
    %30 = arith.addf %27, %29 : vector<8x128xf32>
    %c0_23 = arith.constant 0 : index
    %c0_24 = arith.constant 0 : index
    %31 = vector.load %arg10[%c0_23, %c0_24] : memref<8x128xf32, #tpu.memory_space<vmem>>, vector<8x128xf32>
    tpu.vector_store %arg10[%c0_23, %c0_24], %30 {strides = array<i32>} : memref<8x128xf32, #tpu.memory_space<vmem>>, vector<8x128xf32>,
    return
  }
  func.func @transform_0(%arg0: i32) -> (i32, i32) {
    %c0_i32 = arith.constant 0 : i32
    %c0_i32_0 = arith.constant 0 : i32
    return %arg0, %c0_i32 : i32, i32
  }
  func.func @transform_1(%arg0: i32) -> (i32, i32) {
    %c0_i32 = arith.constant 0 : i32
    %c0_i32_0 = arith.constant 0 : i32
    %c0_i32_1 = arith.constant 0 : i32
    return %c0_i32, %c0_i32_0 : i32, i32
  }
  func.func @transform_2(%arg0: i32) -> (i32, i32) {
    %c0_i32 = arith.constant 0 : i32
    %c0_i32_0 = arith.constant 0 : i32
    %c0_i32_1 = arith.constant 0 : i32
    return %c0_i32, %c0_i32_0 : i32, i32
  }
  func.func @transform_3(%arg0: i32) -> (i32, i32) {
    %c0_i32 = arith.constant 0 : i32
    %c0_i32_0 = arith.constant 0 : i32
    %c0_i32_1 = arith.constant 0 : i32
    return %c0_i32, %c0_i32_0 : i32, i32
  }
  func.func @transform_4(%arg0: i32) -> (i32, i32) {
    %c0_i32 = arith.constant 0 : i32
    %c0_i32_0 = arith.constant 0 : i32
    %c0_i32_1 = arith.constant 0 : i32
    return %c0_i32, %c0_i32_0 : i32, i32
  }
  func.func @transform_5(%arg0: i32) -> (i32, i32) {
    %c0_i32 = arith.constant 0 : i32
    %c0_i32_0 = arith.constant 0 : i32
    %c0_i32_1 = arith.constant 0 : i32
    return %c0_i32, %c0_i32_0 : i32, i32
  }
  func.func @transform_6(%arg0: i32) -> (i32, i32) {
    %c0_i32 = arith.constant 0 : i32
    %c0_i32_0 = arith.constant 0 : i32
    %c0_i32_1 = arith.constant 0 : i32
    return %c0_i32, %c0_i32_0 : i32, i32
  }
  func.func @transform_7(%arg0: i32) -> (i32, i32) {
    %c0_i32 = arith.constant 0 : i32
    %c0_i32_0 = arith.constant 0 : i32
    %c0_i32_1 = arith.constant 0 : i32
    return %c0_i32, %c0_i32_0 : i32, i32
  }
  func.func @transform_8(%arg0: i32) -> (i32, i32) {
    %c0_i32 = arith.constant 0 : i32
    %c0_i32_0 = arith.constant 0 : i32
    %c0_i32_1 = arith.constant 0 : i32
    return %c0_i32, %c0_i32_0 : i32, i32
  }
  func.func @transform_9(%arg0: i32) -> (i32, i32) {
    %c0_i32 = arith.constant 0 : i32
    %c0_i32_0 = arith.constant 0 : i32
    return %arg0, %c0_i32 : i32, i32
  }
}

</mosaic_0001>

<llo_original>
// kernel: tpu_custom_call.1
$region0: #{tpu_custom_call.1}
  #allocation0 [shape = 'u32[]', space=smem, size = 0x4, offset = 0x4, fixed_abs, tag = 'smem constant byte address 0x4 - core index']
  #allocation1 [shape = 'u32[144,128]{1,0:T(1,128)}', space=vmem, size = 0x12000, scoped, tag = 'internal scratch']
  %s0 = inlined_call_operand.vmem [shape: f32[8,17], index: 0, kind: input, shape index: {}]
  %s1 = inlined_call_operand.vmem [shape: bf16[17,256], index: 1, kind: input, shape index: {}]
  %s2 = inlined_call_operand.vmem [shape: f32[1,256], index: 2, kind: input, shape index: {}]
  %s3 = inlined_call_operand.hbm [shape: bf16[256,128], index: 3, kind: input, shape index: {}]
  %s4 = inlined_call_operand.vmem [shape: f32[1,128], index: 4, kind: input, shape index: {}]
  %s5 = inlined_call_operand.vmem [shape: bf16[128,64], index: 5, kind: input, shape index: {}]
  %s6 = inlined_call_operand.vmem [shape: f32[1,64], index: 6, kind: input, shape index: {}]
  %s7 = inlined_call_operand.vmem [shape: bf16[64,128], index: 7, kind: input, shape index: {}]
  %s8 = inlined_call_operand.vmem [shape: f32[1,128], index: 8, kind: input, shape index: {}]
  %s9 = inlined_call_operand.hbm [shape: f32[8,128], index: 9, kind: output, shape index: {}]
  %s10 = sld [smem:[#allocation0]]
  $region50: #{tpu_custom_call.1} parent=0
    _
  %s12 = ssub.s32 1, %s10
  %s13 = scalar_select 0, %s12, %s10
  $region1: #{tpu_custom_call.1} parent=0
    #allocation2 [shape = 'u8[65536]{0}', space=vmem, size = 0x10000, scoped, tag = 'input window, operand 3, single buffered']
    #allocation3 [shape = 's32[1]{0}', space=sflag, size = 0x4, scoped, tag = 'scoped memory for tpu_custom_call.1']
    #allocation4 [shape = 's32[1]{0}', space=sflag, size = 0x4, scoped, tag = 'scoped memory for tpu_custom_call.1']
    #allocation5 [shape = 'u8[4096]{0}', space=vmem, size = 0x1000, scoped, tag = 'output window, operand 0, single buffered']
    %14 = vsyncpa [#allocation3], 0
    %15 = vsyncpa [#allocation4], 0
    // Predicated region
    $region2: #{tpu_custom_call.1} parent=1 // pred_check
      _
    $region3: #{tpu_custom_call.1} parent=1 // pred_check_branch
      %17 = sbr.rel (0) target = $region5
    $region4: #{tpu_custom_call.1} parent=1 // pred_region
      _
    $region5: #{tpu_custom_call.1} parent=1 // pred_fallthru
      _
    // Predicated region
    $region6: #{tpu_custom_call.1} parent=1 // pred_check
      _
    $region7: #{tpu_custom_call.1} parent=1 // pred_check_branch
      %19 = sbr.rel (0) target = $region9
    $region8: #{tpu_custom_call.1} parent=1 // pred_region
      _
    $region9: #{tpu_custom_call.1} parent=1 // pred_fallthru
      _
    // Predicated region
    $region10: #{tpu_custom_call.1} parent=1 // pred_check
      _
    $region11: #{tpu_custom_call.1} parent=1 // pred_check_branch
      %21 = sbr.rel (0) target = $region13
    $region12: #{tpu_custom_call.1} parent=1 // pred_region
      _
    $region13: #{tpu_custom_call.1} parent=1 // pred_fallthru
      _
    // Predicated region
    $region14: #{tpu_custom_call.1} parent=1 // pred_check
      _
    $region15: #{tpu_custom_call.1} parent=1 // pred_check_branch
      %23 = sbr.rel (0) target = $region17
    $region16: #{tpu_custom_call.1} parent=1 // pred_region
      %s25 = ssub.s32 2048, 2048
      %26 = vsyncadd [#allocation3], %s25
      %s27 = sshll.u32 [#allocation2], 4
      %s28 = int_to_ptr.vmem [resolvable:$true] %s27
      %33 = dma.hbm_to_vmem [thread:$0]  %s3, 2048, %s28, [#allocation3], 64, 64, 4
    $region17: #{tpu_custom_call.1} parent=1 // pred_fallthru
      _
    // Predicated region
    $region18: #{tpu_custom_call.1} parent=1 // pred_check
      _
    $region19: #{tpu_custom_call.1} parent=1 // pred_check_branch
      %35 = sbr.rel (0) target = $region21
    $region20: #{tpu_custom_call.1} parent=1 // pred_region
      _
    $region21: #{tpu_custom_call.1} parent=1 // pred_fallthru
      _
    // Predicated region
    $region22: #{tpu_custom_call.1} parent=1 // pred_check
      _
    $region23: #{tpu_custom_call.1} parent=1 // pred_check_branch
      %37 = sbr.rel (0) target = $region25
    $region24: #{tpu_custom_call.1} parent=1 // pred_region
      _
    $region25: #{tpu_custom_call.1} parent=1 // pred_fallthru
      _
    // Predicated region
    $region26: #{tpu_custom_call.1} parent=1 // pred_check
      _
    $region27: #{tpu_custom_call.1} parent=1 // pred_check_branch
      %39 = sbr.rel (0) target = $region29
    $region28: #{tpu_custom_call.1} parent=1 // pred_region
      _
    $region29: #{tpu_custom_call.1} parent=1 // pred_fallthru
      _
    // Predicated region
    $region30: #{tpu_custom_call.1} parent=1 // pred_check
      _
    $region31: #{tpu_custom_call.1} parent=1 // pred_check_branch
      %41 = sbr.rel (0) target = $region33
    $region32: #{tpu_custom_call.1} parent=1 // pred_region
      _
    $region33: #{tpu_custom_call.1} parent=1 // pred_fallthru
      _
    // Predicated region
    $region34: #{tpu_custom_call.1} parent=1 // pred_check
      _
    $region35: #{tpu_custom_call.1} parent=1 // pred_check_branch
      %43 = sbr.rel (0) target = $region37
    $region36: #{tpu_custom_call.1} parent=1 // pred_region
      _
    $region37: #{tpu_custom_call.1} parent=1 // pred_fallthru
      _
    // Predicated region
    $region38: #{tpu_custom_call.1} parent=1 // pred_check
      _
    $region39: #{tpu_custom_call.1} parent=1 // pred_check_branch
      %45 = sbr.rel (0) target = $region41
    $region40: #{tpu_custom_call.1} parent=1 // pred_region
      %46 = dma.done [#allocation3], 2048
    $region41: #{tpu_custom_call.1} parent=1 // pred_fallthru
      _
    %v48 = vld [vmem:[%s0] sm:$0xff]
    %v49 = vpack.c.bf16 %v48, %v48
    %v50 = vld [vmem:[%s1] sm:$0xff]
    %v51 = vld [vmem:[%s1 + $0x8] sm:$0xff]
    %v52 = vld [vmem:[%s1 + $0x10] sm:$0x11]
    %v53 = vld [vmem:[%s2] sm:$0x3]
    %v55 = vlaneseq
    %v56 = vshrl.u32 %v55, 7
    %v57 = vsub.s32 0, %v56
    %v58 = vrot.slane %v53, %v57
    %v59 = vlaneseq
    %v60 = vshrl.u32 %v59, 7
    %v61 = vsub.s32 1, %v60
    %v62 = vrot.slane %v53, %v61
    %v68 = vunpack.c.l.b16 %v50
    %v69 = vunpack.c.h.b16 %v50
    %v70 = vunpack.c.l.b16 %v51
    %v71 = vunpack.c.h.b16 %v51
    %v72 = vunpack.c.l.b16 %v52
    %v73 = vunpack.c.h.b16 %v52
    %v74 = vpack.c.b16 %v70, %v68
    %v75 = vpack.c.b16 %v71, %v69
    %v76 = vpack.c.b16 %v72, %v72
    %v77 = vpack.c.b16 %v73, %v73
    %vm80 = vcmask 138240
    %v82 = vsel %vm80, %v49, 0
    %vm84 = vcmask 1040384
    %v85 = vsel 0, 4294967295, 65535
    %v86 = vsel %vm84, %v85, 0
    %v88 = vand.u32 %v76, %v86
    %v91 = vand.u32 %v77, %v86
    %93 = vmatprep.subr.bf16.mxu0 %v75
    %94 = vmatpush1.bf16.msra.mxu0 %v74
    %95 = vmatprep.subr.bf16.mxu0 %v91
    %96 = vmatpush1.bf16.msra.mxu0 %v88
    %97 = vmatprep.subr.bf16.mxu0 0
    %98 = vmatpush1.bf16.msra.mxu0 0
    %99 = vmatprep.subr.bf16.mxu0 0
    %100 = vmatpush1.bf16.msra.mxu0 0
    %101 = vmatprep.subr.bf16.mxu0 0
    %102 = vmatpush1.bf16.msra.mxu0 0
    %103 = vmatprep.subr.bf16.mxu0 0
    %104 = vmatpush1.bf16.msra.mxu0 0
    %105 = vmatprep.subr.bf16.mxu0 0
    %106 = vmatpush1.bf16.msra.mxu0 0
    %107 = vmatprep.subr.bf16.mxu0 0
    %108 = vmatpush1.bf16.msra.mxu0 0
    %109 = vmatprep.subr.bf16.mxu0 0
    %110 = vmatpush1.bf16.msra.mxu0 0
    %111 = vmatprep.subr.bf16.mxu0 0
    %112 = vmatpush1.bf16.msra.mxu0 0
    %113 = vmatprep.subr.bf16.mxu0 0
    %114 = vmatpush1.bf16.msra.mxu0 0
    %115 = vmatprep.subr.bf16.mxu0 0
    %116 = vmatpush1.bf16.msra.mxu0 0
    %117 = vmatprep.subr.bf16.mxu0 0
    %118 = vmatpush1.bf16.msra.mxu0 0
    %119 = vmatprep.subr.bf16.mxu0 0
    %120 = vmatpush1.bf16.msra.mxu0 0
    %121 = vmatprep.subr.bf16.mxu0 0
    %122 = vmatpush1.bf16.msra.mxu0 0
    %123 = vmatprep.subr.bf16.mxu0 0
    %124 = vmatpush1.bf16.msra.mxu0 0
    %125 = vmatprep.mubr.bf16.mxu0 0
    %126 = vmatmul.mubr.bf16.gmra.mrb[0].mxu0 %v82
    %v127 = vpop.f32.mrb[0].mxu0
    %v128 = vadd.f32 %v58, %v127
    %v129 = vpop.f32.mrb[0].mxu0
    %v130 = vadd.f32 %v62, %v129
    %v131 = vpop.f32.mrb[0].mxu0
    %v132 = vpop.f32.mrb[0].mxu0
    %133 = vdwg.mxu0
    %v134 = vmax.f32 %v128, 0.0
    %v135 = vmax.f32 %v130, 0.0
    %v136 = vpack.c.bf16 %v134, %v134
    %v137 = vpack.c.bf16 %v135, %v135
    %v138 = vld [vmem:[#allocation2] sm:$0xf]
    %v139 = vld [vmem:[#allocation2 + $0x4] sm:$0xf]
    %v140 = vld [vmem:[#allocation2 + $0x8] sm:$0xf]
    %v141 = vld [vmem:[#allocation2 + $0xc] sm:$0xf]
    %v142 = vld [vmem:[#allocation2 + $0x10] sm:$0xf]
    %v143 = vld [vmem:[#allocation2 + $0x14] sm:$0xf]
    %v144 = vld [vmem:[#allocation2 + $0x18] sm:$0xf]
    %v145 = vld [vmem:[#allocation2 + $0x1c] sm:$0xf]
    %v146 = vld [vmem:[#allocation2 + $0x20] sm:$0xf]
    %v147 = vld [vmem:[#allocation2 + $0x24] sm:$0xf]
    %v148 = vld [vmem:[#allocation2 + $0x28] sm:$0xf]
    %v149 = vld [vmem:[#allocation2 + $0x2c] sm:$0xf]
    %v150 = vld [vmem:[#allocation2 + $0x30] sm:$0xf]
    %v151 = vld [vmem:[#allocation2 + $0x34] sm:$0xf]
    %v152 = vld [vmem:[#allocation2 + $0x38] sm:$0xf]
    %v153 = vld [vmem:[#allocation2 + $0x3c] sm:$0xf]
    %v154 = vld [vmem:[#allocation2 + $0x40] sm:$0xf]
    %v155 = vld [vmem:[#allocation2 + $0x44] sm:$0xf]
    %v156 = vld [vmem:[#allocation2 + $0x48] sm:$0xf]
    %v157 = vld [vmem:[#allocation2 + $0x4c] sm:$0xf]
    %v158 = vld [vmem:[#allocation2 + $0x50] sm:$0xf]
    %v159 = vld [vmem:[#allocation2 + $0x54] sm:$0xf]
    %v160 = vld [vmem:[#allocation2 + $0x58] sm:$0xf]
    %v161 = vld [vmem:[#allocation2 + $0x5c] sm:$0xf]
    %v162 = vld [vmem:[#allocation2 + $0x60] sm:$0xf]
    %v163 = vld [vmem:[#allocation2 + $0x64] sm:$0xf]
    %v164 = vld [vmem:[#allocation2 + $0x68] sm:$0xf]
    %v165 = vld [vmem:[#allocation2 + $0x6c] sm:$0xf]
    %v166 = vld [vmem:[#allocation2 + $0x70] sm:$0xf]
    %v167 = vld [vmem:[#allocation2 + $0x74] sm:$0xf]
    %v168 = vld [vmem:[#allocation2 + $0x78] sm:$0xf]
    %v169 = vld [vmem:[#allocation2 + $0x7c] sm:$0xf]
    %v170 = vld [vmem:[%s4] sm:$0x1]
    %v172 = vlaneseq
    %v173 = vshrl.u32 %v172, 7
    %v174 = vsub.s32 0, %v173
    %v175 = vrot.slane %v170, %v174
    %v209 = vunpack.c.l.b16 %v138
    %v210 = vunpack.c.l.b16 %v139
    %v211 = vunpack.c.l.b16 %v140
    %v212 = vunpack.c.l.b16 %v141
    %v213 = vunpack.c.l.b16 %v142
    %v214 = vunpack.c.l.b16 %v143
    %v215 = vunpack.c.l.b16 %v144
    %v216 = vunpack.c.l.b16 %v145
    %v217 = vunpack.c.l.b16 %v146
    %v218 = vunpack.c.l.b16 %v147
    %v219 = vunpack.c.l.b16 %v148
    %v220 = vunpack.c.l.b16 %v149
    %v221 = vunpack.c.l.b16 %v150
    %v222 = vunpack.c.l.b16 %v151
    %v223 = vunpack.c.l.b16 %v152
    %v224 = vunpack.c.l.b16 %v153
    %v225 = vunpack.c.l.b16 %v154
    %v226 = vunpack.c.l.b16 %v155
    %v227 = vunpack.c.l.b16 %v156
    %v228 = vunpack.c.l.b16 %v157
    %v229 = vunpack.c.l.b16 %v158
    %v230 = vunpack.c.l.b16 %v159
    %v231 = vunpack.c.l.b16 %v160
    %v232 = vunpack.c.l.b16 %v161
    %v233 = vunpack.c.l.b16 %v162
    %v234 = vunpack.c.l.b16 %v163
    %v235 = vunpack.c.l.b16 %v164
    %v236 = vunpack.c.l.b16 %v165
    %v237 = vunpack.c.l.b16 %v166
    %v238 = vunpack.c.l.b16 %v167
    %v239 = vunpack.c.l.b16 %v168
    %v240 = vunpack.c.l.b16 %v169
    %v241 = vpack.c.b16 %v210, %v209
    %v242 = vpack.c.b16 %v212, %v211
    %v243 = vpack.c.b16 %v214, %v213
    %v244 = vpack.c.b16 %v216, %v215
    %v245 = vpack.c.b16 %v218, %v217
    %v246 = vpack.c.b16 %v220, %v219
    %v247 = vpack.c.b16 %v222, %v221
    %v248 = vpack.c.b16 %v224, %v223
    %v249 = vpack.c.b16 %v226, %v225
    %v250 = vpack.c.b16 %v228, %v227
    %v251 = vpack.c.b16 %v230, %v229
    %v252 = vpack.c.b16 %v232, %v231
    %v253 = vpack.c.b16 %v234, %v233
    %v254 = vpack.c.b16 %v236, %v235
    %v255 = vpack.c.b16 %v238, %v237
    %v256 = vpack.c.b16 %v240, %v239
    %273 = vmatprep.subr.bf16.mxu0 0
    %274 = vmatpush1.bf16.msra.mxu0 %v241
    %275 = vmatprep.subr.bf16.mxu0 0
    %276 = vmatpush1.bf16.msra.mxu0 %v242
    %277 = vmatprep.subr.bf16.mxu0 0
    %278 = vmatpush1.bf16.msra.mxu0 %v243
    %279 = vmatprep.subr.bf16.mxu0 0
    %280 = vmatpush1.bf16.msra.mxu0 %v244
    %281 = vmatprep.subr.bf16.mxu0 0
    %282 = vmatpush1.bf16.msra.mxu0 %v245
    %283 = vmatprep.subr.bf16.mxu0 0
    %284 = vmatpush1.bf16.msra.mxu0 %v246
    %285 = vmatprep.subr.bf16.mxu0 0
    %286 = vmatpush1.bf16.msra.mxu0 %v247
    %287 = vmatprep.subr.bf16.mxu0 0
    %288 = vmatpush1.bf16.msra.mxu0 %v248
    %289 = vmatprep.subr.bf16.mxu0 0
    %290 = vmatpush1.bf16.msra.mxu0 %v249
    %291 = vmatprep.subr.bf16.mxu0 0
    %292 = vmatpush1.bf16.msra.mxu0 %v250
    %293 = vmatprep.subr.bf16.mxu0 0
    %294 = vmatpush1.bf16.msra.mxu0 %v251
    %295 = vmatprep.subr.bf16.mxu0 0
    %296 = vmatpush1.bf16.msra.mxu0 %v252
    %297 = vmatprep.subr.bf16.mxu0 0
    %298 = vmatpush1.bf16.msra.mxu0 %v253
    %299 = vmatprep.subr.bf16.mxu0 0
    %300 = vmatpush1.bf16.msra.mxu0 %v254
    %301 = vmatprep.subr.bf16.mxu0 0
    %302 = vmatpush1.bf16.msra.mxu0 %v255
    %303 = vmatprep.subr.bf16.mxu0 0
    %304 = vmatpush1.bf16.msra.mxu0 %v256
    %305 = vmatprep.mubr.bf16.mxu0 %v137
    %306 = vmatmul.mubr.bf16.gmra.mrb[0].mxu0 %v136
    %v307 = vpop.f32.mrb[0].mxu0
    %v308 = vadd.f32 %v175, %v307
    %v309 = vpop.f32.mrb[0].mxu0
    %v310 = vpop.f32.mrb[0].mxu0
    %v311 = vpop.f32.mrb[0].mxu0
    %312 = vdwg.mxu0
    %v313 = vmax.f32 %v308, 0.0
    %v314 = vpack.c.bf16 %v313, %v313
    %v315 = vld [vmem:[%s5] sm:$0xf]
    %v316 = vld [vmem:[%s5 + $0x4] sm:$0xf]
    %v317 = vld [vmem:[%s5 + $0x8] sm:$0xf]
    %v318 = vld [vmem:[%s5 + $0xc] sm:$0xf]
    %v319 = vld [vmem:[%s5 + $0x10] sm:$0xf]
    %v320 = vld [vmem:[%s5 + $0x14] sm:$0xf]
    %v321 = vld [vmem:[%s5 + $0x18] sm:$0xf]
    %v322 = vld [vmem:[%s5 + $0x1c] sm:$0xf]
    %v323 = vld [vmem:[%s5 + $0x20] sm:$0xf]
    %v324 = vld [vmem:[%s5 + $0x24] sm:$0xf]
    %v325 = vld [vmem:[%s5 + $0x28] sm:$0xf]
    %v326 = vld [vmem:[%s5 + $0x2c] sm:$0xf]
    %v327 = vld [vmem:[%s5 + $0x30] sm:$0xf]
    %v328 = vld [vmem:[%s5 + $0x34] sm:$0xf]
    %v329 = vld [vmem:[%s5 + $0x38] sm:$0xf]
    %v330 = vld [vmem:[%s5 + $0x3c] sm:$0xf]
    %v331 = vld [vmem:[%s6] sm:$0x1]
    %v333 = vlaneseq
    %v334 = vshrl.u32 %v333, 7
    %v335 = vsub.s32 0, %v334
    %v336 = vrot.slane %v331, %v335
    %v354 = vunpack.c.l.b16 %v315
    %v355 = vunpack.c.l.b16 %v316
    %v356 = vunpack.c.l.b16 %v317
    %v357 = vunpack.c.l.b16 %v318
    %v358 = vunpack.c.l.b16 %v319
    %v359 = vunpack.c.l.b16 %v320
    %v360 = vunpack.c.l.b16 %v321
    %v361 = vunpack.c.l.b16 %v322
    %v362 = vunpack.c.l.b16 %v323
    %v363 = vunpack.c.l.b16 %v324
    %v364 = vunpack.c.l.b16 %v325
    %v365 = vunpack.c.l.b16 %v326
    %v366 = vunpack.c.l.b16 %v327
    %v367 = vunpack.c.l.b16 %v328
    %v368 = vunpack.c.l.b16 %v329
    %v369 = vunpack.c.l.b16 %v330
    %v370 = vpack.c.b16 %v355, %v354
    %v371 = vpack.c.b16 %v357, %v356
    %v372 = vpack.c.b16 %v359, %v358
    %v373 = vpack.c.b16 %v361, %v360
    %v374 = vpack.c.b16 %v363, %v362
    %v375 = vpack.c.b16 %v365, %v364
    %v376 = vpack.c.b16 %v367, %v366
    %v377 = vpack.c.b16 %v369, %v368
    %386 = vmatprep.subr.bf16.mxu0 0
    %387 = vmatpush1.bf16.msra.mxu0 %v370
    %388 = vmatprep.subr.bf16.mxu0 0
    %389 = vmatpush1.bf16.msra.mxu0 %v371
    %390 = vmatprep.subr.bf16.mxu0 0
    %391 = vmatpush1.bf16.msra.mxu0 %v372
    %392 = vmatprep.subr.bf16.mxu0 0
    %393 = vmatpush1.bf16.msra.mxu0 %v373
    %394 = vmatprep.subr.bf16.mxu0 0
    %395 = vmatpush1.bf16.msra.mxu0 %v374
    %396 = vmatprep.subr.bf16.mxu0 0
    %397 = vmatpush1.bf16.msra.mxu0 %v375
    %398 = vmatprep.subr.bf16.mxu0 0
    %399 = vmatpush1.bf16.msra.mxu0 %v376
    %400 = vmatprep.subr.bf16.mxu0 0
    %401 = vmatpush1.bf16.msra.mxu0 %v377
    %402 = vmatprep.subr.bf16.mxu0 0
    %403 = vmatpush1.bf16.msra.mxu0 0
    %404 = vmatprep.subr.bf16.mxu0 0
    %405 = vmatpush1.bf16.msra.mxu0 0
    %406 = vmatprep.subr.bf16.mxu0 0
    %407 = vmatpush1.bf16.msra.mxu0 0
    %408 = vmatprep.subr.bf16.mxu0 0
    %409 = vmatpush1.bf16.msra.mxu0 0
    %410 = vmatprep.subr.bf16.mxu0 0
    %411 = vmatpush1.bf16.msra.mxu0 0
    %412 = vmatprep.subr.bf16.mxu0 0
    %413 = vmatpush1.bf16.msra.mxu0 0
    %414 = vmatprep.subr.bf16.mxu0 0
    %415 = vmatpush1.bf16.msra.mxu0 0
    %416 = vmatprep.subr.bf16.mxu0 0
    %417 = vmatpush1.bf16.msra.mxu0 0
    %418 = vmatprep.mubr.bf16.mxu0 0
    %419 = vmatmul.mubr.bf16.gmra.mrb[0].mxu0 %v314
    %v420 = vpop.f32.mrb[0].mxu0
    %v421 = vadd.f32 %v336, %v420
    %v422 = vpop.f32.mrb[0].mxu0
    %v423 = vpop.f32.mrb[0].mxu0
    %v424 = vpop.f32.mrb[0].mxu0
    %425 = vdwg.mxu0
    %v426 = vmax.f32 %v421, 0.0
    %v427 = vpack.c.bf16 %v426, %v426
    %v428 = vld [vmem:[%s7] sm:$0xf]
    %v429 = vld [vmem:[%s7 + $0x4] sm:$0xf]
    %v430 = vld [vmem:[%s7 + $0x8] sm:$0xf]
    %v431 = vld [vmem:[%s7 + $0xc] sm:$0xf]
    %v432 = vld [vmem:[%s7 + $0x10] sm:$0xf]
    %v433 = vld [vmem:[%s7 + $0x14] sm:$0xf]
    %v434 = vld [vmem:[%s7 + $0x18] sm:$0xf]
    %v435 = vld [vmem:[%s7 + $0x1c] sm:$0xf]
    %v436 = vld [vmem:[%s8] sm:$0x1]
    %v438 = vlaneseq
    %v439 = vshrl.u32 %v438, 7
    %v440 = vsub.s32 0, %v439
    %v441 = vrot.slane %v436, %v440
    %v451 = vunpack.c.l.b16 %v428
    %v452 = vunpack.c.l.b16 %v429
    %v453 = vunpack.c.l.b16 %v430
    %v454 = vunpack.c.l.b16 %v431
    %v455 = vunpack.c.l.b16 %v432
    %v456 = vunpack.c.l.b16 %v433
    %v457 = vunpack.c.l.b16 %v434
    %v458 = vunpack.c.l.b16 %v435
    %v459 = vpack.c.b16 %v452, %v451
    %v460 = vpack.c.b16 %v454, %v453
    %v461 = vpack.c.b16 %v456, %v455
    %v462 = vpack.c.b16 %v458, %v457
    %vm467 = vcmask 523264
    %v469 = vsel %vm467, %v427, 0
    %471 = vmatprep.subr.bf16.mxu0 0
    %472 = vmatpush1.bf16.msra.mxu0 %v459
    %473 = vmatprep.subr.bf16.mxu0 0
    %474 = vmatpush1.bf16.msra.mxu0 %v460
    %475 = vmatprep.subr.bf16.mxu0 0
    %476 = vmatpush1.bf16.msra.mxu0 %v461
    %477 = vmatprep.subr.bf16.mxu0 0
    %478 = vmatpush1.bf16.msra.mxu0 %v462
    %479 = vmatprep.subr.bf16.mxu0 0
    %480 = vmatpush1.bf16.msra.mxu0 0
    %481 = vmatprep.subr.bf16.mxu0 0
    %482 = vmatpush1.bf16.msra.mxu0 0
    %483 = vmatprep.subr.bf16.mxu0 0
    %484 = vmatpush1.bf16.msra.mxu0 0
    %485 = vmatprep.subr.bf16.mxu0 0
    %486 = vmatpush1.bf16.msra.mxu0 0
    %487 = vmatprep.subr.bf16.mxu0 0
    %488 = vmatpush1.bf16.msra.mxu0 0
    %489 = vmatprep.subr.bf16.mxu0 0
    %490 = vmatpush1.bf16.msra.mxu0 0
    %491 = vmatprep.subr.bf16.mxu0 0
    %492 = vmatpush1.bf16.msra.mxu0 0
    %493 = vmatprep.subr.bf16.mxu0 0
    %494 = vmatpush1.bf16.msra.mxu0 0
    %495 = vmatprep.subr.bf16.mxu0 0
    %496 = vmatpush1.bf16.msra.mxu0 0
    %497 = vmatprep.subr.bf16.mxu0 0
    %498 = vmatpush1.bf16.msra.mxu0 0
    %499 = vmatprep.subr.bf16.mxu0 0
    %500 = vmatpush1.bf16.msra.mxu0 0
    %501 = vmatprep.subr.bf16.mxu0 0
    %502 = vmatpush1.bf16.msra.mxu0 0
    %503 = vmatprep.mubr.bf16.mxu0 0
    %504 = vmatmul.mubr.bf16.gmra.mrb[0].mxu0 %v469
    %v505 = vpop.f32.mrb[0].mxu0
    %v506 = vadd.f32 %v441, %v505
    %v507 = vpop.f32.mrb[0].mxu0
    %v508 = vpop.f32.mrb[0].mxu0
    %v509 = vpop.f32.mrb[0].mxu0
    %510 = vdwg.mxu0
    %511 = vst [vmem:[#allocation5] sm:$0xff] %v506
    // Predicated region
    $region42: #{tpu_custom_call.1} parent=1 // pred_check
      _
    $region43: #{tpu_custom_call.1} parent=1 // pred_check_branch
      %513 = sbr.rel (0) target = $region45
    $region44: #{tpu_custom_call.1} parent=1 // pred_region
      %s515 = ssub.s32 128, 128
      %516 = vsyncadd [#allocation4], %s515
      %s518 = sshll.u32 [#allocation5], 4
      %s519 = int_to_ptr.vmem [resolvable:$true] %s518
      %521 = dma.vmem_to_hbm [thread:$0]  %s519, 128, %s9, [#allocation4]
    $region45: #{tpu_custom_call.1} parent=1 // pred_fallthru
      _
    // Predicated region
    $region46: #{tpu_custom_call.1} parent=1 // pred_check
      _
    $region47: #{tpu_custom_call.1} parent=1 // pred_check_branch
      %523 = sbr.rel (0) target = $region49
    $region48: #{tpu_custom_call.1} parent=1 // pred_region
      %524 = dma.done [#allocation4], 128
    $region49: #{tpu_custom_call.1} parent=1 // pred_fallthru
      _
    %525 = vsyncpa [#allocation3], 1
    %526 = vsyncpa [#allocation4], 1

</llo_original>
